<compile_context>
chip_gen: v6e
topology: v6e:2x2x1
jax: 0.10.0
libtpu: 0.0.40
codegen_flags: <defaults>
</compile_context>

<pallas_src>
import jax
import jax.numpy as jnp
from jax.experimental import pallas as pl
from jax.experimental.pallas import tpu as pltpu

_LANE = 128


def policy_kernel(x_ref, w1_ref, b1_ref, w2_ref, b2_ref, o_ref):
    x = x_ref[...]          # [E_blk, B, S]
    w1 = w1_ref[...]        # [S, H]
    b1 = b1_ref[...]        # [1, H]
    w2 = w2_ref[...]        # [H, A_pad]
    b2 = b2_ref[...]        # [1, A_pad]

    e_blk, bsz, s = x.shape
    a_pad = w2.shape[1]

    # Flatten evaluations into rows (B matches the sublane tile -> free reshape)
    # and run both layers as MXU matmuls over the folded batch.
    x_flat = x.reshape(e_blk * bsz, s)                              # [rows, S]
    h = jnp.dot(x_flat, w1, preferred_element_type=jnp.float32) + b1
    h = jnp.maximum(h, 0.0)                                         # relu, [rows, H]
    logits = jnp.dot(h, w2, preferred_element_type=jnp.float32) + b2  # [rows, A_pad]

    # softmax over dim=0 (the batch axis of each evaluation), as in
    # F.softmax(new_x, dim=0): reduce over axis=1 of the [E_blk, B, A_pad] view.
    lg = logits.reshape(e_blk, bsz, a_pad)
    m = jnp.max(lg, axis=1, keepdims=True)                          # [E_blk, 1, A_pad]
    e = jnp.exp(lg - m)                                             # [E_blk, B, A_pad]
    denom = jnp.sum(e, axis=1, keepdims=True)                       # [E_blk, 1, A_pad]
    o_ref[...] = (e / denom).astype(o_ref.dtype)


def policy_forward_batched(xs, w1, b1, w2, b2):
    """xs: [E, B, S] float32 -- E independent policy evaluations in one call.

    w1: [S, H], b1: [H], w2: [H, A], b2: [A] (Linear weights pre-transposed to
    [in_features, out_features]).  Returns [E, B, A]; softmax is over the batch
    axis of each evaluation, matching F.softmax(..., dim=0).
    """
    E, B, S = xs.shape
    H = w1.shape[1]
    A = w2.shape[1]
    A_pad = max(_LANE, ((A + _LANE - 1) // _LANE) * _LANE)

    # 2 grid steps when possible so v7x's two TensorCores split the evaluations
    # ("parallel" axis); a second step is essentially free on v5e/v6e.
    num_steps = 2 if (E >= 2 and E % 2 == 0) else 1
    E_blk = E // num_steps

    # Lane-dense output: pad the action axis to a multiple of 128 (zero weights
    # / zero bias in the padded columns; each padded column softmaxes to a
    # harmless constant and is sliced off below).
    w2p = jnp.zeros((H, A_pad), w2.dtype).at[:, :A].set(w2)
    b2p = jnp.zeros((1, A_pad), b2.dtype).at[0, :A].set(b2)
    b1r = b1.reshape(1, H)

    cost = pl.CostEstimate(
        flops=2 * E * B * (S * H + H * A_pad),
        transcendentals=E * B * A_pad,
        bytes_accessed=4 * (E * B * S + S * H + H + H * A_pad + A_pad
                            + E * B * A_pad),
    )

    out = pl.pallas_call(
        policy_kernel,
        out_shape=jax.ShapeDtypeStruct((E, B, A_pad), jnp.float32),
        grid=(num_steps,),
        in_specs=[
            # Folded block of evaluations (one or two big contiguous DMAs).
            pl.BlockSpec((E_blk, B, S), lambda e: (e, 0, 0)),
            # Weights / biases: constant index_map -> resident across grid steps.
            pl.BlockSpec((S, H), lambda e: (0, 0)),
            pl.BlockSpec((1, H), lambda e: (0, 0)),
            pl.BlockSpec((H, A_pad), lambda e: (0, 0)),
            pl.BlockSpec((1, A_pad), lambda e: (0, 0)),
        ],
        out_specs=pl.BlockSpec((E_blk, B, A_pad), lambda e: (e, 0, 0)),
        compiler_params=pltpu.CompilerParams(
            # Evaluations are truly independent (softmax is per-evaluation over
            # its own batch) -> safe to shard across v7x's 2 TensorCores.
            dimension_semantics=("parallel",),
        ),
        cost_estimate=cost,
    )(xs, w1, b1r, w2p, b2p)
    return out[:, :, :A]


def policy_forward(x, w1, b1, w2, b2):
    """Single evaluation, identical semantics to Policy.forward(x) with x [B, S]."""
    return policy_forward_batched(x[None], w1, b1, w2, b2)[0]


def policy_reference(x, w1, b1, w2, b2):
    h = jnp.maximum(x @ w1 + b1, 0.0)
    logits = h @ w2 + b2
    return jax.nn.softmax(logits, axis=0)


if __name__ == "__main__":
    # Small shapes consistent with the module defaults.
    state_size, action_size, hidden_size = 4, 3, 15
    batch = 8
    n_evals = 16   # amortize launch/DMA overhead over many evaluations

    key = jax.random.PRNGKey(0)
    kx, k1, kb1, k2, kb2 = jax.random.split(key, 5)

    xs = jax.random.normal(kx, (n_evals, batch, state_size), dtype=jnp.float32)

    # Deterministic synthetic parameters (Linear weights stored transposed:
    # [in_features, out_features]).
    bound1 = 1.0 / (state_size ** 0.5)
    w1 = jax.random.uniform(k1, (state_size, hidden_size), jnp.float32,
                            minval=-bound1, maxval=bound1)
    b1 = jax.random.uniform(kb1, (hidden_size,), jnp.float32,
                            minval=-bound1, maxval=bound1)
    bound2 = 1.0 / (hidden_size ** 0.5)
    w2 = jax.random.uniform(k2, (hidden_size, action_size), jnp.float32,
                            minval=-bound2, maxval=bound2)
    b2 = jax.random.uniform(kb2, (action_size,), jnp.float32,
                            minval=-bound2, maxval=bound2)

    # Batched: many independent policy evaluations in ONE pallas_call
    # (grid of 1-2 big blocks instead of E micro-steps).
    out = jax.block_until_ready(policy_forward_batched(xs, w1, b1, w2, b2))
    ref = jax.vmap(lambda x: policy_reference(x, w1, b1, w2, b2))(xs)
    assert out.shape == (n_evals, batch, action_size)
    assert jnp.allclose(out, ref, atol=1e-5, rtol=1e-5), "mismatch vs JAX reference"
    # probabilities sum to 1 along dim=0 (batch axis) of every evaluation
    assert jnp.allclose(jnp.sum(out, axis=1),
                        jnp.ones((n_evals, action_size)), atol=1e-5)

    # Single-evaluation call, equivalent to the PyTorch module's forward(x).
    out1 = jax.block_until_ready(policy_forward(xs[0], w1, b1, w2, b2))
    ref1 = policy_reference(xs[0], w1, b1, w2, b2)
    assert out1.shape == (batch, action_size)
    assert jnp.allclose(out1, ref1, atol=1e-5, rtol=1e-5), "single-eval mismatch"

    print("KERNEL_OK")
</pallas_src>

<mosaic_0001>
module attributes {stable_mosaic.version = 11 : i64} {
  func.func @policy_kernel(%arg0: i32, %arg1: memref<8x8x4xf32, #tpu.memory_space<vmem>>, %arg2: memref<4x15xf32, #tpu.memory_space<vmem>>, %arg3: memref<1x15xf32, #tpu.memory_space<vmem>>, %arg4: memref<15x128xf32, #tpu.memory_space<vmem>>, %arg5: memref<1x128xf32, #tpu.memory_space<vmem>>, %arg6: memref<8x8x128xf32, #tpu.memory_space<vmem>>) attributes {dimension_semantics = [#tpu.dimension_semantics<parallel>], iteration_bounds = array<i64: 2>, scalar_prefetch = 0 : i64, scratch_operands = 0 : i64, tpu.core_type = #tpu.core_type<tc>, window_params = [{transform_indices = @transform_0, window_bounds = array<i64: 8, 8, 4>}, {pipeline_mode = #tpu.pipeline_mode<synchronous>, transform_indices = @transform_1, window_bounds = array<i64: 4, 15>}, {pipeline_mode = #tpu.pipeline_mode<synchronous>, transform_indices = @transform_2, window_bounds = array<i64: 1, 15>}, {pipeline_mode = #tpu.pipeline_mode<synchronous>, transform_indices = @transform_3, window_bounds = array<i64: 15, 128>}, {pipeline_mode = #tpu.pipeline_mode<synchronous>, transform_indices = @transform_4, window_bounds = array<i64: 1, 128>}, {transform_indices = @transform_5, window_bounds = array<i64: 8, 8, 128>}]} {
    %c0 = arith.constant 0 : index
    %c0_0 = arith.constant 0 : index
    %c0_1 = arith.constant 0 : index
    %0 = vector.load %arg1[%c0, %c0_0, %c0_1] : memref<8x8x4xf32, #tpu.memory_space<vmem>>, vector<8x8x4xf32>
    %c0_2 = arith.constant 0 : index
    %c0_3 = arith.constant 0 : index
    %1 = vector.load %arg2[%c0_2, %c0_3] : memref<4x15xf32, #tpu.memory_space<vmem>>, vector<4x15xf32>
    %c0_4 = arith.constant 0 : index
    %c0_5 = arith.constant 0 : index
    %2 = vector.load %arg3[%c0_4, %c0_5] : memref<1x15xf32, #tpu.memory_space<vmem>>, vector<1x15xf32>
    %c0_6 = arith.constant 0 : index
    %c0_7 = arith.constant 0 : index
    %3 = vector.load %arg4[%c0_6, %c0_7] : memref<15x128xf32, #tpu.memory_space<vmem>>, vector<15x128xf32>
    %c0_8 = arith.constant 0 : index
    %c0_9 = arith.constant 0 : index
    %4 = vector.load %arg5[%c0_8, %c0_9] : memref<1x128xf32, #tpu.memory_space<vmem>>, vector<1x128xf32>
    %5 = vector.shape_cast %0 : vector<8x8x4xf32> to vector<64x4xf32>
    %cst = arith.constant dense<0.000000e+00> : vector<64x15xf32>
    %6 = tpu.matmul %5, %1, %cst {dimension_numbers = #tpu.dot_dimension_numbers<[1], [0], [0], [1], [0, 0, 1, 1], [], []>} : vector<64x4xf32>, vector<4x15xf32>, vector<64x15xf32> -> vector<64x15xf32>
    %7 = vector.broadcast %2 : vector<1x15xf32> to vector<64x15xf32>
    %8 = arith.addf %6, %7 : vector<64x15xf32>
    %cst_10 = arith.constant 0.000000e+00 : f32
    %9 = vector.broadcast %cst_10 : f32 to vector<64x15xf32>
    %10 = arith.maximumf %8, %9 : vector<64x15xf32>
    %cst_11 = arith.constant dense<0.000000e+00> : vector<64x128xf32>
    %11 = tpu.matmul %10, %3, %cst_11 {dimension_numbers = #tpu.dot_dimension_numbers<[1], [0], [0], [1], [0, 0, 1, 1], [], []>} : vector<64x15xf32>, vector<15x128xf32>, vector<64x128xf32> -> vector<64x128xf32>
    %12 = vector.broadcast %4 : vector<1x128xf32> to vector<64x128xf32>
    %13 = arith.addf %11, %12 : vector<64x128xf32>
    %14 = vector.shape_cast %13 : vector<64x128xf32> to vector<8x8x128xf32>
    %cst_12 = arith.constant dense<0xFF800000> : vector<8x128xf32>
    %15 = vector.multi_reduction <maximumf>, %14, %cst_12 [1] : vector<8x8x128xf32> to vector<8x128xf32>
    %16 = vector.shape_cast %15 : vector<8x128xf32> to vector<8x1x128xf32>
    %17 = vector.broadcast %16 : vector<8x1x128xf32> to vector<8x8x128xf32>
    %18 = arith.subf %14, %17 : vector<8x8x128xf32>
    %19 = math.exp %18 : vector<8x8x128xf32>
    %cst_13 = arith.constant dense<0.000000e+00> : vector<8x128xf32>
    %20 = vector.multi_reduction <add>, %19, %cst_13 [1] : vector<8x8x128xf32> to vector<8x128xf32>
    %21 = vector.shape_cast %20 : vector<8x128xf32> to vector<8x1x128xf32>
    %22 = vector.broadcast %21 : vector<8x1x128xf32> to vector<8x8x128xf32>
    %23 = arith.divf %19, %22 : vector<8x8x128xf32>
    %c0_14 = arith.constant 0 : index
    %c0_15 = arith.constant 0 : index
    %c0_16 = arith.constant 0 : index
    %24 = vector.load %arg6[%c0_14, %c0_15, %c0_16] : memref<8x8x128xf32, #tpu.memory_space<vmem>>, vector<8x8x128xf32>
    tpu.vector_store %arg6[%c0_14, %c0_15, %c0_16], %23 {strides = array<i32>} : memref<8x8x128xf32, #tpu.memory_space<vmem>>, vector<8x8x128xf32>,
    return
  }
  func.func @transform_0(%arg0: i32) -> (i32, i32, i32) {
    %c0_i32 = arith.constant 0 : i32
    %c0_i32_0 = arith.constant 0 : i32
    %c0_i32_1 = arith.constant 0 : i32
    return %arg0, %c0_i32, %c0_i32_0 : i32, i32, i32
  }
  func.func @transform_1(%arg0: i32) -> (i32, i32) {
    %c0_i32 = arith.constant 0 : i32
    %c0_i32_0 = arith.constant 0 : i32
    %c0_i32_1 = arith.constant 0 : i32
    return %c0_i32, %c0_i32_0 : i32, i32
  }
  func.func @transform_2(%arg0: i32) -> (i32, i32) {
    %c0_i32 = arith.constant 0 : i32
    %c0_i32_0 = arith.constant 0 : i32
    %c0_i32_1 = arith.constant 0 : i32
    return %c0_i32, %c0_i32_0 : i32, i32
  }
  func.func @transform_3(%arg0: i32) -> (i32, i32) {
    %c0_i32 = arith.constant 0 : i32
    %c0_i32_0 = arith.constant 0 : i32
    %c0_i32_1 = arith.constant 0 : i32
    return %c0_i32, %c0_i32_0 : i32, i32
  }
  func.func @transform_4(%arg0: i32) -> (i32, i32) {
    %c0_i32 = arith.constant 0 : i32
    %c0_i32_0 = arith.constant 0 : i32
    %c0_i32_1 = arith.constant 0 : i32
    return %c0_i32, %c0_i32_0 : i32, i32
  }
  func.func @transform_5(%arg0: i32) -> (i32, i32, i32) {
    %c0_i32 = arith.constant 0 : i32
    %c0_i32_0 = arith.constant 0 : i32
    %c0_i32_1 = arith.constant 0 : i32
    return %arg0, %c0_i32, %c0_i32_0 : i32, i32, i32
  }
}

</mosaic_0001>

<llo_original>
// kernel: tpu_custom_call.1
$region0: #{tpu_custom_call.1}
  #allocation0 [shape = 'u32[]', space=smem, size = 0x4, offset = 0x4, fixed_abs, tag = 'smem constant byte address 0x4 - core index']
  #allocation1 [shape = 'u32[144,128]{1,0:T(1,128)}', space=vmem, size = 0x12000, scoped, tag = 'internal scratch']
  %s0 = inlined_call_operand.vmem [shape: f32[16,8,4], index: 0, kind: input, shape index: {}]
  %s1 = inlined_call_operand.vmem [shape: f32[4,15], index: 1, kind: input, shape index: {}]
  %s2 = inlined_call_operand.vmem [shape: f32[1,15], index: 2, kind: input, shape index: {}]
  %s3 = inlined_call_operand.vmem [shape: f32[15,128], index: 3, kind: input, shape index: {}]
  %s4 = inlined_call_operand.vmem [shape: f32[1,128], index: 4, kind: input, shape index: {}]
  %s5 = inlined_call_operand.hbm [shape: f32[16,8,128], index: 5, kind: output, shape index: {}]
  %s6 = sld [smem:[#allocation0]]
  $region53: #{tpu_custom_call.1} parent=0
    _
  %s8 = ssub.s32 1, %s6
  %s9 = scalar_select 0, %s8, %s6
  $region1: #{tpu_custom_call.1} parent=0
    #allocation2 [shape = 'u8[65536]{0}', space=vmem, size = 0x10000, scoped, tag = 'output window, operand 0']
    #allocation3 [shape = 's32[2]{0}', space=sflag, size = 0x8, scoped, tag = 'scoped memory for tpu_custom_call.1']
    %10 = vsyncpa [#allocation3], 0
    %s11 = scalar_lea.sflag [#allocation3], 1
    %12 = vsyncpa %s11, 0
    loop: start=0, step=1, limit=4
    $region2: #{tpu_custom_call.1} parent=1 // loop_pre_header
      _
    $region3: #{tpu_custom_call.1} parent=1 // loop_header
      %s14 = sphi 0, %s18
      %p15 = scmp.ge.s32.totalorder %s14, 4
      %s24 = sphi 0, %s26
      %s27 = sphi 0, %s24
      %s28 = sphi 0, %s27
      %s44 = sphi 0, %s28
      %s48 = sphi 0, %s48
      %s50 = sphi 0, %s48
      %s51 = sphi 0, %s50
      %s65 = sphi 0, %s51
      %s69 = sphi 0, %s69
      %s71 = sphi 0, %s69
      %s72 = sphi 0, %s71
      %s86 = sphi 0, %s72
      %s90 = sphi 0, %s90
      %s92 = sphi 0, %s90
      %s93 = sphi 0, %s92
      %s107 = sphi 0, %s93
      %s111 = sphi 0, %s111
      %s113 = sphi 0, %s111
      %s114 = sphi 0, %s113
      %s128 = sphi 0, %s114
      %s134 = sphi 0, %s136
      %s137 = sphi 0, %s134
      %s138 = sphi 0, %s137
      %s154 = sphi 0, %s138
    $region4: #{tpu_custom_call.1} parent=1 // loop_header_branch
      %17 = sbr.rel (%p15) target = $region8
    $region5: #{tpu_custom_call.1} parent=1 // loop_body
      %s19 = ssub.s32 %s14, 1
      %s20 = ssub.s32 %s14, 2
      %s21 = sadd.s32 %s14, 1
      %s22 = ssub.s32 %s14, %s21
      %p23 = scmp.eq.s32.totalorder %s22, 0
      %s25 = sadd.s32 %s24, 1
      %s26 = scalar_select %p23, %s24, %s25
      %p29 = pneg %p23
      %p30 = scmp.eq.s32.totalorder %s14, 1
      %p31 = por %p29, %p30
      %p32 = scmp.ne.s32.totalorder %s24, %s27
      %p33 = scmp.eq.s32.totalorder %s14, 0
      %p34 = por %p32, %p33
      %p35 = scmp.ne.s32.totalorder %s24, %s27
      %p36 = scmp.eq.s32.totalorder %s19, 1
      %p37 = por %p35, %p36
      %p38 = scmp.ne.s32.totalorder %s27, %s28
      %p39 = scmp.eq.s32.totalorder %s19, 0
      %p40 = por %p38, %p39
      %p41 = scmp.ne.s32.totalorder %s27, %s28
      %p42 = scmp.eq.s32.totalorder %s20, 1
      %p43 = por %p41, %p42
      %p45 = scmp.ne.s32.totalorder %s28, %s44
      %p46 = scmp.eq.s32.totalorder %s20, 0
      %p47 = por %p45, %p46
      %s49 = sadd.s32 %s48, 1
      %p52 = scmp.eq.s32.totalorder %s14, 1
      %p53 = scmp.ne.s32.totalorder %s48, %s50
      %p54 = scmp.eq.s32.totalorder %s14, 0
      %p55 = por %p53, %p54
      %p56 = scmp.ne.s32.totalorder %s48, %s50
      %p57 = scmp.eq.s32.totalorder %s19, 1
      %p58 = por %p56, %p57
      %p59 = scmp.ne.s32.totalorder %s50, %s51
      %p60 = scmp.eq.s32.totalorder %s19, 0
      %p61 = por %p59, %p60
      %p62 = scmp.ne.s32.totalorder %s50, %s51
      %p63 = scmp.eq.s32.totalorder %s20, 1
      %p64 = por %p62, %p63
      %p66 = scmp.ne.s32.totalorder %s51, %s65
      %p67 = scmp.eq.s32.totalorder %s20, 0
      %p68 = por %p66, %p67
      %s70 = sadd.s32 %s69, 1
      %p73 = scmp.eq.s32.totalorder %s14, 1
      %p74 = scmp.ne.s32.totalorder %s69, %s71
      %p75 = scmp.eq.s32.totalorder %s14, 0
      %p76 = por %p74, %p75
      %p77 = scmp.ne.s32.totalorder %s69, %s71
      %p78 = scmp.eq.s32.totalorder %s19, 1
      %p79 = por %p77, %p78
      %p80 = scmp.ne.s32.totalorder %s71, %s72
      %p81 = scmp.eq.s32.totalorder %s19, 0
      %p82 = por %p80, %p81
      %p83 = scmp.ne.s32.totalorder %s71, %s72
      %p84 = scmp.eq.s32.totalorder %s20, 1
      %p85 = por %p83, %p84
      %p87 = scmp.ne.s32.totalorder %s72, %s86
      %p88 = scmp.eq.s32.totalorder %s20, 0
      %p89 = por %p87, %p88
      %s91 = sadd.s32 %s90, 1
      %p94 = scmp.eq.s32.totalorder %s14, 1
      %p95 = scmp.ne.s32.totalorder %s90, %s92
      %p96 = scmp.eq.s32.totalorder %s14, 0
      %p97 = por %p95, %p96
      %p98 = scmp.ne.s32.totalorder %s90, %s92
      %p99 = scmp.eq.s32.totalorder %s19, 1
      %p100 = por %p98, %p99
      %p101 = scmp.ne.s32.totalorder %s92, %s93
      %p102 = scmp.eq.s32.totalorder %s19, 0
      %p103 = por %p101, %p102
      %p104 = scmp.ne.s32.totalorder %s92, %s93
      %p105 = scmp.eq.s32.totalorder %s20, 1
      %p106 = por %p104, %p105
      %p108 = scmp.ne.s32.totalorder %s93, %s107
      %p109 = scmp.eq.s32.totalorder %s20, 0
      %p110 = por %p108, %p109
      %s112 = sadd.s32 %s111, 1
      %p115 = scmp.eq.s32.totalorder %s14, 1
      %p116 = scmp.ne.s32.totalorder %s111, %s113
      %p117 = scmp.eq.s32.totalorder %s14, 0
      %p118 = por %p116, %p117
      %p119 = scmp.ne.s32.totalorder %s111, %s113
      %p120 = scmp.eq.s32.totalorder %s19, 1
      %p121 = por %p119, %p120
      %p122 = scmp.ne.s32.totalorder %s113, %s114
      %p123 = scmp.eq.s32.totalorder %s19, 0
      %p124 = por %p122, %p123
      %p125 = scmp.ne.s32.totalorder %s113, %s114
      %p126 = scmp.eq.s32.totalorder %s20, 1
      %p127 = por %p125, %p126
      %p129 = scmp.ne.s32.totalorder %s114, %s128
      %p130 = scmp.eq.s32.totalorder %s20, 0
      %p131 = por %p129, %p130
      %s132 = ssub.s32 %s14, %s21
      %p133 = scmp.eq.s32.totalorder %s132, 0
      %s135 = sadd.s32 %s134, 1
      %s136 = scalar_select %p133, %s134, %s135
      %p139 = pneg %p133
      %p140 = scmp.eq.s32.totalorder %s14, 1
      %p141 = por %p139, %p140
      %p142 = scmp.ne.s32.totalorder %s134, %s137
      %p143 = scmp.eq.s32.totalorder %s14, 0
      %p144 = por %p142, %p143
      %p145 = scmp.ne.s32.totalorder %s134, %s137
      %p146 = scmp.eq.s32.totalorder %s19, 1
      %p147 = por %p145, %p146
      %p148 = scmp.ne.s32.totalorder %s137, %s138
      %p149 = scmp.eq.s32.totalorder %s19, 0
      %p150 = por %p148, %p149
      %p151 = scmp.ne.s32.totalorder %s137, %s138
      %p152 = scmp.eq.s32.totalorder %s20, 1
      %p153 = por %p151, %p152
      %p155 = scmp.ne.s32.totalorder %s138, %s154
      %p156 = scmp.eq.s32.totalorder %s20, 0
      %p157 = por %p155, %p156
      %p158 = scmp.le.s32.totalorder 1, %s14
      %p159 = scmp.lt.s32.totalorder %s14, 3
      %p160 = pnand %p158, %p159
      %p161 = pneg %p160
      // Predicated region
      $region9: #{tpu_custom_call.1} parent=5 // pred_check
        _
      $region10: #{tpu_custom_call.1} parent=5 // pred_check_branch
        %163 = sbr.rel (%p160) target = $region12
      $region11: #{tpu_custom_call.1} parent=5 // pred_region
        %s164 = ssub.s32 %s14, 1
        // Predicated region
        $region13: #{tpu_custom_call.1} parent=11 // pred_check
          %p165 = pneg %p61
        $region14: #{tpu_custom_call.1} parent=11 // pred_check_branch
          %167 = sbr.rel (%p165) target = $region16
        $region15: #{tpu_custom_call.1} parent=11 // pred_region
          _
        $region16: #{tpu_custom_call.1} parent=11 // pred_fallthru
          _
        // Predicated region
        $region17: #{tpu_custom_call.1} parent=11 // pred_check
          %p168 = pneg %p82
        $region18: #{tpu_custom_call.1} parent=11 // pred_check_branch
          %170 = sbr.rel (%p168) target = $region20
        $region19: #{tpu_custom_call.1} parent=11 // pred_region
          _
        $region20: #{tpu_custom_call.1} parent=11 // pred_fallthru
          _
        // Predicated region
        $region21: #{tpu_custom_call.1} parent=11 // pred_check
          %p171 = pneg %p103
        $region22: #{tpu_custom_call.1} parent=11 // pred_check_branch
          %173 = sbr.rel (%p171) target = $region24
        $region23: #{tpu_custom_call.1} parent=11 // pred_region
          _
        $region24: #{tpu_custom_call.1} parent=11 // pred_fallthru
          _
        // Predicated region
        $region25: #{tpu_custom_call.1} parent=11 // pred_check
          %p174 = pneg %p124
        $region26: #{tpu_custom_call.1} parent=11 // pred_check_branch
          %176 = sbr.rel (%p174) target = $region28
        $region27: #{tpu_custom_call.1} parent=11 // pred_region
          _
        $region28: #{tpu_custom_call.1} parent=11 // pred_fallthru
          _
      $region12: #{tpu_custom_call.1} parent=5 // pred_fallthru
        _
      %p177 = scmp.lt.s32.totalorder %s14, 2
      // Predicated region
      $region29: #{tpu_custom_call.1} parent=5 // pred_check
        %p178 = pneg %p177
      $region30: #{tpu_custom_call.1} parent=5 // pred_check_branch
        %180 = sbr.rel (%p178) target = $region32
      $region31: #{tpu_custom_call.1} parent=5 // pred_region
        // Predicated region
        $region33: #{tpu_custom_call.1} parent=31 // pred_check
          %p181 = pneg %p34
        $region34: #{tpu_custom_call.1} parent=31 // pred_check_branch
          %183 = sbr.rel (%p181) target = $region36
        $region35: #{tpu_custom_call.1} parent=31 // pred_region
          %s184 = smul.u32 8, %s14
          %p185 = scmp.lt.s32.totalorder %s184, 15
          %s186 = scalar_select %p185, %s184, 15
          %s187 = smul.addr %s186, 8
          %s188 = scalar_lea.vmem %s0, %s187
          %s189 = smul.u32 8, %s14
        $region36: #{tpu_custom_call.1} parent=31 // pred_fallthru
          _
      $region32: #{tpu_custom_call.1} parent=5 // pred_fallthru
        _
      %p190 = scmp.le.s32.totalorder 1, %s14
      %p191 = scmp.lt.s32.totalorder %s14, 3
      %p192 = pnand %p190, %p191
      %p193 = pneg %p192
      // Predicated region
      $region37: #{tpu_custom_call.1} parent=5 // pred_check
        _
      $region38: #{tpu_custom_call.1} parent=5 // pred_check_branch
        %195 = sbr.rel (%p192) target = $region40
      $region39: #{tpu_custom_call.1} parent=5 // pred_region
        %s196 = ssub.s32 %s14, 1
        %s197 = smul.u32 8, %s19
        %p198 = scmp.lt.s32.totalorder %s197, 15
        %s199 = scalar_select %p198, %s197, 15
        %s200 = smul.addr %s199, 8
        %s201 = scalar_lea.vmem %s0, %s200
        %p202 = pneg %p40
        %p203 = pneg %p37
        %p204 = pneg %p61
        %p205 = pneg %p58
        %p206 = pneg %p82
        %p207 = pneg %p79
        %p208 = pneg %p103
        %p209 = pneg %p100
        %p210 = pneg %p124
        %p211 = pneg %p121
        %p212 = pneg %p150
        %p213 = pneg %p147
        %s214 = sand.u32 %s137, 1
        %s215 = scalar_lea.sflag [#allocation3], %s214
        %s216 = sand.u32 %s137, 1
        %s217 = smul.addr %s216, 64
        %s218 = scalar_lea.vmem [#allocation2], %s217
        %s219 = smul.u32 8, %s19
        %p220 = scmp.lt.s32.totalorder %s219, 15
        %s221 = scalar_select %p220, %s219, 15
        %s222 = smul.addr %s221, 8
        %s223 = scalar_lea.vmem %s0, %s222
        %s224 = smul.u32 8, %s19
        %s225 = smul.u32 8, %s19
        %v226 = vld [vmem:[%s223] sm:$0xff]
        %v227 = vld [vmem:[%s223 + $0x8] sm:$0xff]
        %v228 = vld [vmem:[%s223 + $0x10] sm:$0xff]
        %v229 = vld [vmem:[%s223 + $0x18] sm:$0xff]
        %v230 = vld [vmem:[%s223 + $0x20] sm:$0xff]
        %v231 = vld [vmem:[%s223 + $0x28] sm:$0xff]
        %v232 = vld [vmem:[%s223 + $0x30] sm:$0xff]
        %v233 = vld [vmem:[%s223 + $0x38] sm:$0xff]
        %v234 = vld [vmem:[%s1] sm:$0xf]
        %v235 = vld [vmem:[%s2] sm:$0x1]
        %v236 = vld [vmem:[%s3] sm:$0xff]
        %v237 = vld [vmem:[%s3 + $0x8] sm:$0x7f]
        %v238 = vld [vmem:[%s4] sm:$0x1]
        %v240 = vlaneseq
        %v241 = vshrl.u32 %v240, 7
        %v242 = vsub.s32 0, %v241
        %v243 = vrot.slane %v235, %v242
        %vm245 = vcmask 31744
        %v247 = vsel %vm245, %v226, 0
        %v250 = vsel %vm245, %v227, 0
        %v253 = vsel %vm245, %v228, 0
        %v256 = vsel %vm245, %v229, 0
        %v259 = vsel %vm245, %v230, 0
        %v262 = vsel %vm245, %v231, 0
        %v265 = vsel %vm245, %v232, 0
        %v268 = vsel %vm245, %v233, 0
        %vm270 = vcmask 1043456
        %v272 = vsel %vm270, %v234, 0
        %274 = vmatprep.subr.mxu0 0.0
        %275 = vmatpush1.msra.mxu0 0.0
        %276 = vmatprep.subr.mxu0 0.0
        %277 = vmatpush1.msra.mxu0 0.0
        %278 = vmatprep.subr.mxu0 0.0
        %279 = vmatpush1.msra.mxu0 0.0
        %280 = vmatprep.subr.mxu0 0.0
        %281 = vmatpush1.msra.mxu0 0.0
        %282 = vmatprep.subr.mxu0 0.0
        %283 = vmatpush1.msra.mxu0 0.0
        %284 = vmatprep.subr.mxu0 0.0
        %285 = vmatpush1.msra.mxu0 0.0
        %286 = vmatprep.subr.mxu0 0.0
        %287 = vmatpush1.msra.mxu0 0.0
        %288 = vmatprep.subr.mxu0 0.0
        %289 = vmatpush1.msra.mxu0 0.0
        %290 = vmatprep.subr.mxu0 0.0
        %291 = vmatpush1.msra.mxu0 0.0
        %292 = vmatprep.subr.mxu0 0.0
        %293 = vmatpush1.msra.mxu0 0.0
        %294 = vmatprep.subr.mxu0 0.0
        %295 = vmatpush1.msra.mxu0 0.0
        %296 = vmatprep.subr.mxu0 0.0
        %297 = vmatpush1.msra.mxu0 0.0
        %298 = vmatprep.subr.mxu0 0.0
        %299 = vmatpush1.msra.mxu0 0.0
        %300 = vmatprep.subr.mxu0 0.0
        %301 = vmatpush1.msra.mxu0 0.0
        %302 = vmatprep.subr.mxu0 0.0
        %303 = vmatpush1.msra.mxu0 0.0
        %304 = vmatprep.subr.mxu0 0.0
        %305 = vmatpush1.msra.mxu0 %v272
        %306 = vmatprep.subr.mxu0 0.0
        %307 = vmatpush2.msra.mxu0 0.0
        %308 = vmatprep.subr.mxu0 0.0
        %309 = vmatpush2.msra.mxu0 0.0
        %310 = vmatprep.subr.mxu0 0.0
        %311 = vmatpush2.msra.mxu0 0.0
        %312 = vmatprep.subr.mxu0 0.0
        %313 = vmatpush2.msra.mxu0 0.0
        %314 = vmatprep.subr.mxu0 0.0
        %315 = vmatpush2.msra.mxu0 0.0
        %316 = vmatprep.subr.mxu0 0.0
        %317 = vmatpush2.msra.mxu0 0.0
        %318 = vmatprep.subr.mxu0 0.0
        %319 = vmatpush2.msra.mxu0 0.0
        %320 = vmatprep.subr.mxu0 0.0
        %321 = vmatpush2.msra.mxu0 0.0
        %322 = vmatprep.subr.mxu0 0.0
        %323 = vmatpush2.msra.mxu0 0.0
        %324 = vmatprep.subr.mxu0 0.0
        %325 = vmatpush2.msra.mxu0 0.0
        %326 = vmatprep.subr.mxu0 0.0
        %327 = vmatpush2.msra.mxu0 0.0
        %328 = vmatprep.subr.mxu0 0.0
        %329 = vmatpush2.msra.mxu0 0.0
        %330 = vmatprep.subr.mxu0 0.0
        %331 = vmatpush2.msra.mxu0 0.0
        %332 = vmatprep.subr.mxu0 0.0
        %333 = vmatpush2.msra.mxu0 0.0
        %334 = vmatprep.subr.mxu0 0.0
        %335 = vmatpush2.msra.mxu0 0.0
        %336 = vmatprep.subr.mxu0 0.0
        %337 = vmatpush2.msra.mxu0 0.0
        %338 = vmatprep.mubr.f32.mxu0 0.0
        %339 = vmatmul.mubr.f32.gmra.mxu0 %v247
        %v340 = vpop.f32.mrf.mxu0
        %v341 = vadd.f32 %v243, %v340
        %v342 = vpop.f32.mrf.mxu0
        %343 = vmatprep.mubr.f32.mxu0 0.0
        %344 = vmatmul.mubr.f32.gmra.mxu0 %v250
        %v345 = vpop.f32.mrf.mxu0
        %v346 = vadd.f32 %v243, %v345
        %v347 = vpop.f32.mrf.mxu0
        %348 = vmatprep.mubr.f32.mxu0 0.0
        %349 = vmatmul.mubr.f32.gmra.mxu0 %v253
        %v350 = vpop.f32.mrf.mxu0
        %v351 = vadd.f32 %v243, %v350
        %v352 = vpop.f32.mrf.mxu0
        %353 = vmatprep.mubr.f32.mxu0 0.0
        %354 = vmatmul.mubr.f32.gmra.mxu0 %v256
        %v355 = vpop.f32.mrf.mxu0
        %v356 = vadd.f32 %v243, %v355
        %v357 = vpop.f32.mrf.mxu0
        %358 = vmatprep.mubr.f32.mxu0 0.0
        %359 = vmatmul.mubr.f32.gmra.mxu0 %v259
        %v360 = vpop.f32.mrf.mxu0
        %v361 = vadd.f32 %v243, %v360
        %v362 = vpop.f32.mrf.mxu0
        %363 = vmatprep.mubr.f32.mxu0 0.0
        %364 = vmatmul.mubr.f32.gmra.mxu0 %v262
        %v365 = vpop.f32.mrf.mxu0
        %v366 = vadd.f32 %v243, %v365
        %v367 = vpop.f32.mrf.mxu0
        %368 = vmatprep.mubr.f32.mxu0 0.0
        %369 = vmatmul.mubr.f32.gmra.mxu0 %v265
        %v370 = vpop.f32.mrf.mxu0
        %v371 = vadd.f32 %v243, %v370
        %v372 = vpop.f32.mrf.mxu0
        %373 = vmatprep.mubr.f32.mxu0 0.0
        %374 = vmatmul.mubr.f32.gmra.mxu0 %v268
        %v375 = vpop.f32.mrf.mxu0
        %v376 = vadd.f32 %v243, %v375
        %v377 = vpop.f32.mrf.mxu0
        %378 = vdwg.mxu0
        %v379 = vmax.f32 %v341, 0.0
        %v380 = vmax.f32 %v346, 0.0
        %v381 = vmax.f32 %v351, 0.0
        %v382 = vmax.f32 %v356, 0.0
        %v383 = vmax.f32 %v361, 0.0
        %v384 = vmax.f32 %v366, 0.0
        %v385 = vmax.f32 %v371, 0.0
        %v386 = vmax.f32 %v376, 0.0
        %v388 = vlaneseq
        %v389 = vshrl.u32 %v388, 7
        %v390 = vsub.s32 0, %v389
        %v391 = vrot.slane %v238, %v390
        %vm393 = vcmask 121856
        %v395 = vsel %vm393, %v379, 0
        %v398 = vsel %vm393, %v380, 0
        %v401 = vsel %vm393, %v381, 0
        %v404 = vsel %vm393, %v382, 0
        %v407 = vsel %vm393, %v383, 0
        %v410 = vsel %vm393, %v384, 0
        %v413 = vsel %vm393, %v385, 0
        %v416 = vsel %vm393, %v386, 0
        %vm418 = vcmask 1046528
        %v420 = vsel %vm418, %v237, 0
        %422 = vmatprep.subr.mxu0 0.0
        %423 = vmatpush1.msra.mxu0 0.0
        %424 = vmatprep.subr.mxu0 0.0
        %425 = vmatpush1.msra.mxu0 0.0
        %426 = vmatprep.subr.mxu0 0.0
        %427 = vmatpush1.msra.mxu0 0.0
        %428 = vmatprep.subr.mxu0 0.0
        %429 = vmatpush1.msra.mxu0 0.0
        %430 = vmatprep.subr.mxu0 0.0
        %431 = vmatpush1.msra.mxu0 0.0
        %432 = vmatprep.subr.mxu0 0.0
        %433 = vmatpush1.msra.mxu0 0.0
        %434 = vmatprep.subr.mxu0 0.0
        %435 = vmatpush1.msra.mxu0 0.0
        %436 = vmatprep.subr.mxu0 0.0
        %437 = vmatpush1.msra.mxu0 0.0
        %438 = vmatprep.subr.mxu0 0.0
        %439 = vmatpush1.msra.mxu0 0.0
        %440 = vmatprep.subr.mxu0 0.0
        %441 = vmatpush1.msra.mxu0 0.0
        %442 = vmatprep.subr.mxu0 0.0
        %443 = vmatpush1.msra.mxu0 0.0
        %444 = vmatprep.subr.mxu0 0.0
        %445 = vmatpush1.msra.mxu0 0.0
        %446 = vmatprep.subr.mxu0 0.0
        %447 = vmatpush1.msra.mxu0 0.0
        %448 = vmatprep.subr.mxu0 0.0
        %449 = vmatpush1.msra.mxu0 0.0
        %450 = vmatprep.subr.mxu0 0.0
        %451 = vmatpush1.msra.mxu0 %v420
        %452 = vmatprep.subr.mxu0 0.0
        %453 = vmatpush1.msra.mxu0 %v236
        %454 = vmatprep.subr.mxu0 0.0
        %455 = vmatpush2.msra.mxu0 0.0
        %456 = vmatprep.subr.mxu0 0.0
        %457 = vmatpush2.msra.mxu0 0.0
        %458 = vmatprep.subr.mxu0 0.0
        %459 = vmatpush2.msra.mxu0 0.0
        %460 = vmatprep.subr.mxu0 0.0
        %461 = vmatpush2.msra.mxu0 0.0
        %462 = vmatprep.subr.mxu0 0.0
        %463 = vmatpush2.msra.mxu0 0.0
        %464 = vmatprep.subr.mxu0 0.0
        %465 = vmatpush2.msra.mxu0 0.0
        %466 = vmatprep.subr.mxu0 0.0
        %467 = vmatpush2.msra.mxu0 0.0
        %468 = vmatprep.subr.mxu0 0.0
        %469 = vmatpush2.msra.mxu0 0.0
        %470 = vmatprep.subr.mxu0 0.0
        %471 = vmatpush2.msra.mxu0 0.0
        %472 = vmatprep.subr.mxu0 0.0
        %473 = vmatpush2.msra.mxu0 0.0
        %474 = vmatprep.subr.mxu0 0.0
        %475 = vmatpush2.msra.mxu0 0.0
        %476 = vmatprep.subr.mxu0 0.0
        %477 = vmatpush2.msra.mxu0 0.0
        %478 = vmatprep.subr.mxu0 0.0
        %479 = vmatpush2.msra.mxu0 0.0
        %480 = vmatprep.subr.mxu0 0.0
        %481 = vmatpush2.msra.mxu0 0.0
        %482 = vmatprep.subr.mxu0 0.0
        %483 = vmatpush2.msra.mxu0 0.0
        %484 = vmatprep.subr.mxu0 0.0
        %485 = vmatpush2.msra.mxu0 0.0
        %486 = vmatprep.mubr.f32.mxu0 0.0
        %487 = vmatmul.mubr.f32.gmra.mxu0 %v395
        %v488 = vpop.f32.mrf.mxu0
        %v489 = vadd.f32 %v391, %v488
        %v490 = vpop.f32.mrf.mxu0
        %491 = vmatprep.mubr.f32.mxu0 0.0
        %492 = vmatmul.mubr.f32.gmra.mxu0 %v398
        %v493 = vpop.f32.mrf.mxu0
        %v494 = vadd.f32 %v391, %v493
        %v495 = vpop.f32.mrf.mxu0
        %496 = vmatprep.mubr.f32.mxu0 0.0
        %497 = vmatmul.mubr.f32.gmra.mxu0 %v401
        %v498 = vpop.f32.mrf.mxu0
        %v499 = vadd.f32 %v391, %v498
        %v500 = vpop.f32.mrf.mxu0
        %501 = vmatprep.mubr.f32.mxu0 0.0
        %502 = vmatmul.mubr.f32.gmra.mxu0 %v404
        %v503 = vpop.f32.mrf.mxu0
        %v504 = vadd.f32 %v391, %v503
        %v505 = vpop.f32.mrf.mxu0
        %506 = vmatprep.mubr.f32.mxu0 0.0
        %507 = vmatmul.mubr.f32.gmra.mxu0 %v407
        %v508 = vpop.f32.mrf.mxu0
        %v509 = vadd.f32 %v391, %v508
        %v510 = vpop.f32.mrf.mxu0
        %511 = vmatprep.mubr.f32.mxu0 0.0
        %512 = vmatmul.mubr.f32.gmra.mxu0 %v410
        %v513 = vpop.f32.mrf.mxu0
        %v514 = vadd.f32 %v391, %v513
        %v515 = vpop.f32.mrf.mxu0
        %516 = vmatprep.mubr.f32.mxu0 0.0
        %517 = vmatmul.mubr.f32.gmra.mxu0 %v413
        %v518 = vpop.f32.mrf.mxu0
        %v519 = vadd.f32 %v391, %v518
        %v520 = vpop.f32.mrf.mxu0
        %521 = vmatprep.mubr.f32.mxu0 0.0
        %522 = vmatmul.mubr.f32.gmra.mxu0 %v416
        %v523 = vpop.f32.mrf.mxu0
        %v524 = vadd.f32 %v391, %v523
        %v525 = vpop.f32.mrf.mxu0
        %526 = vdwg.mxu0
        %v527 = vrot.slane %v489, 4
        %v528 = vmax.f32 %v489, %v527
        %v529 = vrot.slane %v528, 2
        %v530 = vmax.f32 %v528, %v529
        %v531 = vrot.slane %v530, 1
        %v532 = vmax.f32 %v530, %v531
        %v533 = vrot.slane %v494, 4
        %v534 = vmax.f32 %v494, %v533
        %v535 = vrot.slane %v534, 2
        %v536 = vmax.f32 %v534, %v535
        %v537 = vrot.slane %v536, 1
        %v538 = vmax.f32 %v536, %v537
        %v539 = vrot.slane %v499, 4
        %v540 = vmax.f32 %v499, %v539
        %v541 = vrot.slane %v540, 2
        %v542 = vmax.f32 %v540, %v541
        %v543 = vrot.slane %v542, 1
        %v544 = vmax.f32 %v542, %v543
        %v545 = vrot.slane %v504, 4
        %v546 = vmax.f32 %v504, %v545
        %v547 = vrot.slane %v546, 2
        %v548 = vmax.f32 %v546, %v547
        %v549 = vrot.slane %v548, 1
        %v550 = vmax.f32 %v548, %v549
        %v551 = vrot.slane %v509, 4
        %v552 = vmax.f32 %v509, %v551
        %v553 = vrot.slane %v552, 2
        %v554 = vmax.f32 %v552, %v553
        %v555 = vrot.slane %v554, 1
        %v556 = vmax.f32 %v554, %v555
        %v557 = vrot.slane %v514, 4
        %v558 = vmax.f32 %v514, %v557
        %v559 = vrot.slane %v558, 2
        %v560 = vmax.f32 %v558, %v559
        %v561 = vrot.slane %v560, 1
        %v562 = vmax.f32 %v560, %v561
        %v563 = vrot.slane %v519, 4
        %v564 = vmax.f32 %v519, %v563
        %v565 = vrot.slane %v564, 2
        %v566 = vmax.f32 %v564, %v565
        %v567 = vrot.slane %v566, 1
        %v568 = vmax.f32 %v566, %v567
        %v569 = vrot.slane %v524, 4
        %v570 = vmax.f32 %v524, %v569
        %v571 = vrot.slane %v570, 2
        %v572 = vmax.f32 %v570, %v571
        %v573 = vrot.slane %v572, 1
        %v574 = vmax.f32 %v572, %v573
        %v575 = vsub.f32 %v489, %v532
        %v576 = vsub.f32 %v494, %v538
        %v577 = vsub.f32 %v499, %v544
        %v578 = vsub.f32 %v504, %v550
        %v579 = vsub.f32 %v509, %v556
        %v580 = vsub.f32 %v514, %v562
        %v581 = vsub.f32 %v519, %v568
        %v582 = vsub.f32 %v524, %v574
        %v583 = vmul.f32 %v575, 1.442695
        %v584 = vpow.pop %v583
        %v585 = vmul.f32 %v576, 1.442695
        %v586 = vpow.pop %v585
        %v587 = vmul.f32 %v577, 1.442695
        %v588 = vpow.pop %v587
        %v589 = vmul.f32 %v578, 1.442695
        %v590 = vpow.pop %v589
        %v591 = vmul.f32 %v579, 1.442695
        %v592 = vpow.pop %v591
        %v593 = vmul.f32 %v580, 1.442695
        %v594 = vpow.pop %v593
        %v595 = vmul.f32 %v581, 1.442695
        %v596 = vpow.pop %v595
        %v597 = vmul.f32 %v582, 1.442695
        %v598 = vpow.pop %v597
        %v599 = vrot.slane %v584, 4
        %v600 = vadd.f32 %v584, %v599
        %v601 = vrot.slane %v600, 2
        %v602 = vadd.f32 %v600, %v601
        %v603 = vrot.slane %v602, 1
        %v604 = vadd.f32 %v602, %v603
        %v605 = vrot.slane %v586, 4
        %v606 = vadd.f32 %v586, %v605
        %v607 = vrot.slane %v606, 2
        %v608 = vadd.f32 %v606, %v607
        %v609 = vrot.slane %v608, 1
        %v610 = vadd.f32 %v608, %v609
        %v611 = vrot.slane %v588, 4
        %v612 = vadd.f32 %v588, %v611
        %v613 = vrot.slane %v612, 2
        %v614 = vadd.f32 %v612, %v613
        %v615 = vrot.slane %v614, 1
        %v616 = vadd.f32 %v614, %v615
        %v617 = vrot.slane %v590, 4
        %v618 = vadd.f32 %v590, %v617
        %v619 = vrot.slane %v618, 2
        %v620 = vadd.f32 %v618, %v619
        %v621 = vrot.slane %v620, 1
        %v622 = vadd.f32 %v620, %v621
        %v623 = vrot.slane %v592, 4
        %v624 = vadd.f32 %v592, %v623
        %v625 = vrot.slane %v624, 2
        %v626 = vadd.f32 %v624, %v625
        %v627 = vrot.slane %v626, 1
        %v628 = vadd.f32 %v626, %v627
        %v629 = vrot.slane %v594, 4
        %v630 = vadd.f32 %v594, %v629
        %v631 = vrot.slane %v630, 2
        %v632 = vadd.f32 %v630, %v631
        %v633 = vrot.slane %v632, 1
        %v634 = vadd.f32 %v632, %v633
        %v635 = vrot.slane %v596, 4
        %v636 = vadd.f32 %v596, %v635
        %v637 = vrot.slane %v636, 2
        %v638 = vadd.f32 %v636, %v637
        %v639 = vrot.slane %v638, 1
        %v640 = vadd.f32 %v638, %v639
        %v641 = vrot.slane %v598, 4
        %v642 = vadd.f32 %v598, %v641
        %v643 = vrot.slane %v642, 2
        %v644 = vadd.f32 %v642, %v643
        %v645 = vrot.slane %v644, 1
        %v646 = vadd.f32 %v644, %v645
        %v647 = vrcp.pop %v604
        %v648 = vmul.f32 %v584, %v647
        %v649 = vrcp.pop %v610
        %v650 = vmul.f32 %v586, %v649
        %v651 = vrcp.pop %v616
        %v652 = vmul.f32 %v588, %v651
        %v653 = vrcp.pop %v622
        %v654 = vmul.f32 %v590, %v653
        %v655 = vrcp.pop %v628
        %v656 = vmul.f32 %v592, %v655
        %v657 = vrcp.pop %v634
        %v658 = vmul.f32 %v594, %v657
        %v659 = vrcp.pop %v640
        %v660 = vmul.f32 %v596, %v659
        %v661 = vrcp.pop %v646
        %v662 = vmul.f32 %v598, %v661
        %663 = vst [vmem:[%s218] sm:$0xff] %v648
        %664 = vst [vmem:[%s218 + $0x8] sm:$0xff] %v650
        %665 = vst [vmem:[%s218 + $0x10] sm:$0xff] %v652
        %666 = vst [vmem:[%s218 + $0x18] sm:$0xff] %v654
        %667 = vst [vmem:[%s218 + $0x20] sm:$0xff] %v656
        %668 = vst [vmem:[%s218 + $0x28] sm:$0xff] %v658
        %669 = vst [vmem:[%s218 + $0x30] sm:$0xff] %v660
        %670 = vst [vmem:[%s218 + $0x38] sm:$0xff] %v662
        %s671 = sand.u32 %s137, 1
        %s672 = scalar_lea.sflag [#allocation3], %s671
        %s673 = sand.u32 %s137, 1
        %s674 = smul.addr %s673, 64
        %s675 = scalar_lea.vmem [#allocation2], %s674
        // Predicated region
        $region41: #{tpu_custom_call.1} parent=39 // pred_check
          %p676 = pneg %p147
        $region42: #{tpu_custom_call.1} parent=39 // pred_check_branch
          %678 = sbr.rel (%p676) target = $region44
        $region43: #{tpu_custom_call.1} parent=39 // pred_region
          %s679 = smul.u32 8, %s19
          %s681 = ssub.s32 1024, 1024
          %682 = vsyncadd %s672, %s681
          %s683 = smul.addr %s679, 128
          %s684 = scalar_lea.hbm %s5, %s683
          %s685 = sshll.u32 %s675, 4
          %s686 = int_to_ptr.vmem [resolvable:$true] %s685
          %691 = dma.vmem_to_hbm [thread:$0]  %s686, 1024, %s684, %s672, 128, 128, 8
        $region44: #{tpu_custom_call.1} parent=39 // pred_fallthru
          _
      $region40: #{tpu_custom_call.1} parent=5 // pred_fallthru
        _
      %p692 = scmp.le.s32.totalorder 2, %s14
      // Predicated region
      $region45: #{tpu_custom_call.1} parent=5 // pred_check
        %p693 = pneg %p692
      $region46: #{tpu_custom_call.1} parent=5 // pred_check_branch
        %695 = sbr.rel (%p693) target = $region48
      $region47: #{tpu_custom_call.1} parent=5 // pred_region
        %s696 = ssub.s32 %s14, 2
        // Predicated region
        $region49: #{tpu_custom_call.1} parent=47 // pred_check
          %p697 = pneg %p153
        $region50: #{tpu_custom_call.1} parent=47 // pred_check_branch
          %699 = sbr.rel (%p697) target = $region52
        $region51: #{tpu_custom_call.1} parent=47 // pred_region
          %s700 = sand.u32 %s138, 1
          %s701 = scalar_lea.sflag [#allocation3], %s700
          %s702 = sand.u32 %s138, 1
          %s703 = smul.addr %s702, 64
          %s704 = scalar_lea.vmem [#allocation2], %s703
          %705 = dma.done %s701, 1024
        $region52: #{tpu_custom_call.1} parent=47 // pred_fallthru
          _
      $region48: #{tpu_custom_call.1} parent=5 // pred_fallthru
        _
    $region6: #{tpu_custom_call.1} parent=1 // loop_footer
      %s18 = sadd.s32 1, %s14
    $region7: #{tpu_custom_call.1} parent=1 // loop_footer_branch
      %13 = sbr.rel target = $region3
    $region8: #{tpu_custom_call.1} parent=1 // loop_exit
      _
    %706 = vsyncpa [#allocation3], 1
    %s707 = scalar_lea.sflag [#allocation3], 1
    %708 = vsyncpa %s707, 1

</llo_original>
